<compile_context>
chip_gen: v7x
topology: tpu7x:2x2x1
jax: 0.10.0
libtpu: 0.0.40
codegen_flags: <defaults>
</compile_context>

<pallas_src>
import functools
from typing import NamedTuple

import jax
import jax.numpy as jnp
from jax.experimental import pallas as pl
from jax.experimental.pallas import tpu as pltpu


def _round_up(x, m):
    return ((x + m - 1) // m) * m


# ---------------------------------------------------------------------------
# One-time parameter packing (hoisted out of the per-call wrapper).
# ---------------------------------------------------------------------------
class PackedMDNParams(NamedTuple):
    Wh: jax.Array        # [D, H]
    bh: jax.Array        # [1, H]  (f32)
    W_head: jax.Array    # [H, P]  = [Wpi | Wmu | Wsig | zero-pad]
    b_head: jax.Array    # [1, P]  (f32)
    n_gaussians: int
    lane_width: int      # P


def prepack_params(params, *, lane_dense_output=True,
                   compute_dtype=jnp.float32):
    """Packs the three head projections into one lane-dense weight slab.

    Do this ONCE (e.g. right after init / checkpoint load), not per forward.
    `compute_dtype=jnp.bfloat16` halves weight DMA bytes at scaled-up dims
    (keeps f32 biases / f32 accumulation); keep f32 for tight tolerances.
    """
    Wh, bh, Wpi, bpi, Wmu, bmu, Wsig, bsig = params
    G = Wpi.shape[1]

    W_head = jnp.concatenate([Wpi, Wmu, Wsig], axis=1)           # [H, 3G]
    b_head = jnp.concatenate([bpi, bmu, bsig], axis=1)           # [1, 3G]

    if lane_dense_output:
        P = _round_up(max(3 * G, 128), 128)                      # unmasked vst
    else:
        P = 3 * G                                                # narrow writeback
    lane_pad = P - 3 * G
    if lane_pad:
        W_head = jnp.pad(W_head, ((0, 0), (0, lane_pad)))
        b_head = jnp.pad(b_head, ((0, 0), (0, lane_pad)))

    return PackedMDNParams(
        Wh=Wh.astype(compute_dtype),
        bh=bh.astype(jnp.float32),
        W_head=W_head.astype(compute_dtype),
        b_head=b_head.astype(jnp.float32),
        n_gaussians=G,
        lane_width=P,
    )


# ---------------------------------------------------------------------------
# Kernel
# ---------------------------------------------------------------------------
def mdn_kernel(x_ref, wh_ref, bh_ref, whead_ref, bhead_ref, out_ref, *,
               n_gaussians):
    """Fused MDN forward for one batch tile.

    out_ref packs [pi | mu | sigma | pad] along the lane axis:
      lanes [0, G)      -> pi (softmax over these lanes only)
      lanes [G, 2G)     -> mu (raw linear)
      lanes [2G, 3G)    -> sigma = exp(linear)
      lanes [3G, P)     -> zero padding (sliced off by the wrapper)
    """
    g = n_gaussians
    x = x_ref[...]                                               # [TB, D]

    # Hidden layer + tanh (f32 accumulate / f32 epilogue).
    h = jnp.tanh(
        jnp.dot(x, wh_ref[...], preferred_element_type=jnp.float32)
        + bh_ref[...]
    )                                                            # [TB, H]

    # Single fused head matmul: [TB, H] @ [H, P] -> [TB, P].
    head = (jnp.dot(h.astype(whead_ref.dtype), whead_ref[...],
                    preferred_element_type=jnp.float32)
            + bhead_ref[...])                                    # [TB, P]

    # (1, P) lane masks; broadcasting carries them across rows for free.
    p_lanes = head.shape[1]
    lane = jax.lax.broadcasted_iota(jnp.int32, (1, p_lanes), dimension=1)
    is_pi = lane < g
    is_sigma = (lane >= 2 * g) & (lane < 3 * g)

    neg_inf = jnp.float32(-jnp.inf)

    # Stable softmax max over the pi lanes only.
    pi_logits = jnp.where(is_pi, head, neg_inf)                  # [TB, P]
    m = jnp.max(pi_logits, axis=-1, keepdims=True)               # [TB, 1]

    # ONE full-width exp:
    #   pi lanes    -> exp(logit - m)
    #   sigma lanes -> exp(linear)
    #   mu / pad    -> exp(-inf) = 0   (mu lanes take `head` directly below)
    e = jnp.exp(jnp.where(is_sigma, head, pi_logits - m))        # [TB, P]

    # Softmax denominator restricted to pi lanes (sigma lanes hold real exps).
    s = jnp.sum(jnp.where(is_pi, e, jnp.float32(0.0)), axis=-1, keepdims=True)
    inv = pl.reciprocal(s, approx=False)

    # Single lane-dense store.
    out_ref[...] = jnp.where(is_pi, e * inv, jnp.where(is_sigma, e, head))


# ---------------------------------------------------------------------------
# Wrapper
# ---------------------------------------------------------------------------
def mdn_forward(x, packed, *, tile_b=None, core_parallel=False,
                single_buffer_weights=False, return_packed=False):
    """Runs the MDN forward pass with a batch-tiled fused Pallas kernel.

    Args:
      x: [B, D] inputs.
      packed: PackedMDNParams from `prepack_params`.
      tile_b: optional batch tile override (rounded up to a multiple of 8).
      core_parallel: v7x only — shard the batch grid axis across both
        TensorCores (requires a >=2-step grid to help).
      single_buffer_weights: use pl.Buffered(1) on the grid-invariant
        weight/bias BlockSpecs (saves VMEM for scaled-up dims, e.g. v7x).
      return_packed: return the single [B, 3G] packed slab instead of
        three column slices (pi = [:, :G], mu = [:, G:2G], sigma = [:, 2G:]).
    """
    B, D = x.shape
    Wh, bh, W_head, b_head, G, P = packed
    H = Wh.shape[1]

    if x.dtype != Wh.dtype:
        x = x.astype(Wh.dtype)

    # Balanced, sublane-aligned batch tiles: bounds padding to <8 rows/tile.
    if tile_b is None:
        n_tiles = max(1, pl.cdiv(B, 512))
        tb = _round_up(pl.cdiv(B, n_tiles), 8)
    else:
        tb = _round_up(tile_b, 8)
    B_pad = _round_up(B, tb)
    x_p = x if B_pad == B else jnp.pad(x, ((0, B_pad - B), (0, 0)))
    grid = (B_pad // tb,)

    # Grid-invariant weights/biases: always block (0, 0) so the pipeline keeps
    # them resident (no re-DMA between consecutive steps).
    weight_mode = pl.Buffered(1) if single_buffer_weights else None

    def full(shape):
        if weight_mode is None:
            return pl.BlockSpec(shape, lambda i: (0, 0))
        return pl.BlockSpec(shape, lambda i: (0, 0), pipeline_mode=weight_mode)

    # v7x: CORE_PARALLEL actually splits the batch axis across the 2 TCs;
    # plain "parallel" is kept as the portable default (v5e/v6e: 1 TC).
    sem = (pltpu.CORE_PARALLEL,) if core_parallel else ("parallel",)

    out_packed = pl.pallas_call(
        functools.partial(mdn_kernel, n_gaussians=G),
        out_shape=jax.ShapeDtypeStruct((B_pad, P), jnp.float32),
        grid=grid,
        in_specs=[
            pl.BlockSpec((tb, D), lambda i: (i, 0)),   # x (batch tiled)
            full((D, H)), full((1, H)),                # hidden layer
            full((H, P)), full((1, P)),                # fused heads
        ],
        out_specs=pl.BlockSpec((tb, P), lambda i: (i, 0)),
        compiler_params=pltpu.CompilerParams(dimension_semantics=sem),
    )(x_p, Wh, bh, W_head, b_head)

    if return_packed:
        return out_packed[:B, :3 * G]

    pi = out_packed[:B, 0:G]
    mu = out_packed[:B, G:2 * G]
    sigma = out_packed[:B, 2 * G:3 * G]
    return pi, mu, sigma


# ---------------------------------------------------------------------------
# Init + pure-JAX reference
# ---------------------------------------------------------------------------
def init_params(key, input_dim, hidden_dim, n_gaussians):
    """Deterministic synthetic init (PyTorch-style uniform fan-in bound)."""
    ks = jax.random.split(key, 8)

    def linear(kw, kb, fan_in, fan_out):
        bound = 1.0 / jnp.sqrt(fan_in)
        W = jax.random.uniform(kw, (fan_in, fan_out), jnp.float32, -bound, bound)
        b = jax.random.uniform(kb, (1, fan_out), jnp.float32, -bound, bound)
        return W, b

    Wh, bh = linear(ks[0], ks[1], input_dim, hidden_dim)
    Wpi, bpi = linear(ks[2], ks[3], hidden_dim, n_gaussians)
    Wmu, bmu = linear(ks[4], ks[5], hidden_dim, n_gaussians)
    Wsig, bsig = linear(ks[6], ks[7], hidden_dim, n_gaussians)
    return (Wh, bh, Wpi, bpi, Wmu, bmu, Wsig, bsig)


def mdn_reference(x, params):
    """Pure-JAX reference for correctness checking."""
    Wh, bh, Wpi, bpi, Wmu, bmu, Wsig, bsig = params
    h = jnp.tanh(x @ Wh + bh)
    pi = jax.nn.softmax(h @ Wpi + bpi, axis=1)
    mu = h @ Wmu + bmu
    sigma = jnp.exp(h @ Wsig + bsig)
    return pi, mu, sigma


if __name__ == "__main__":
    key = jax.random.PRNGKey(0)
    k_x, k_p = jax.random.split(key)

    B, input_dim, hidden_dim, n_gaussians = 8, 16, 32, 8

    x = jax.random.normal(k_x, (B, input_dim), dtype=jnp.float32)
    params = init_params(k_p, input_dim, hidden_dim, n_gaussians)

    # One-time head packing; keep f32 for the 1e-5 tolerance check.
    packed = prepack_params(params)

    pi, mu, sigma = mdn_forward(x, packed)
    jax.block_until_ready((pi, mu, sigma))

    # Sanity check against pure-JAX reference.
    pi_r, mu_r, sigma_r = mdn_reference(x, params)
    assert jnp.allclose(pi, pi_r, atol=1e-5, rtol=1e-5)
    assert jnp.allclose(mu, mu_r, atol=1e-5, rtol=1e-5)
    assert jnp.allclose(sigma, sigma_r, atol=1e-5, rtol=1e-5)
    assert jnp.allclose(jnp.sum(pi, axis=1), jnp.ones((B,)), atol=1e-5)

    print("KERNEL_OK")
</pallas_src>

<mosaic_0001>
module attributes {stable_mosaic.version = 11 : i64} {
  func.func @mdn_kernel(%arg0: i32, %arg1: memref<8x16xf32, #tpu.memory_space<vmem>>, %arg2: memref<16x32xf32, #tpu.memory_space<vmem>>, %arg3: memref<1x32xf32, #tpu.memory_space<vmem>>, %arg4: memref<32x128xf32, #tpu.memory_space<vmem>>, %arg5: memref<1x128xf32, #tpu.memory_space<vmem>>, %arg6: memref<8x128xf32, #tpu.memory_space<vmem>>) attributes {dimension_semantics = [#tpu.dimension_semantics<parallel>], iteration_bounds = array<i64: 1>, scalar_prefetch = 0 : i64, scratch_operands = 0 : i64, tpu.core_type = #tpu.core_type<tc>, window_params = [{transform_indices = @transform_0, window_bounds = array<i64: 8, 16>}, {pipeline_mode = #tpu.pipeline_mode<synchronous>, transform_indices = @transform_1, window_bounds = array<i64: 16, 32>}, {pipeline_mode = #tpu.pipeline_mode<synchronous>, transform_indices = @transform_2, window_bounds = array<i64: 1, 32>}, {pipeline_mode = #tpu.pipeline_mode<synchronous>, transform_indices = @transform_3, window_bounds = array<i64: 32, 128>}, {pipeline_mode = #tpu.pipeline_mode<synchronous>, transform_indices = @transform_4, window_bounds = array<i64: 1, 128>}, {transform_indices = @transform_5, window_bounds = array<i64: 8, 128>}]} {
    %c0 = arith.constant 0 : index
    %c0_0 = arith.constant 0 : index
    %0 = vector.load %arg1[%c0, %c0_0] : memref<8x16xf32, #tpu.memory_space<vmem>>, vector<8x16xf32>
    %c0_1 = arith.constant 0 : index
    %c0_2 = arith.constant 0 : index
    %1 = vector.load %arg2[%c0_1, %c0_2] : memref<16x32xf32, #tpu.memory_space<vmem>>, vector<16x32xf32>
    %cst = arith.constant dense<0.000000e+00> : vector<8x32xf32>
    %2 = tpu.matmul %0, %1, %cst {dimension_numbers = #tpu.dot_dimension_numbers<[1], [0], [0], [1], [0, 0, 1, 1], [], []>} : vector<8x16xf32>, vector<16x32xf32>, vector<8x32xf32> -> vector<8x32xf32>
    %c0_3 = arith.constant 0 : index
    %c0_4 = arith.constant 0 : index
    %3 = vector.load %arg3[%c0_3, %c0_4] : memref<1x32xf32, #tpu.memory_space<vmem>>, vector<1x32xf32>
    %4 = vector.broadcast %3 : vector<1x32xf32> to vector<8x32xf32>
    %5 = arith.addf %2, %4 : vector<8x32xf32>
    %6 = math.tanh %5 : vector<8x32xf32>
    %c0_5 = arith.constant 0 : index
    %c0_6 = arith.constant 0 : index
    %7 = vector.load %arg4[%c0_5, %c0_6] : memref<32x128xf32, #tpu.memory_space<vmem>>, vector<32x128xf32>
    %cst_7 = arith.constant dense<0.000000e+00> : vector<8x128xf32>
    %8 = tpu.matmul %6, %7, %cst_7 {dimension_numbers = #tpu.dot_dimension_numbers<[1], [0], [0], [1], [0, 0, 1, 1], [], []>} : vector<8x32xf32>, vector<32x128xf32>, vector<8x128xf32> -> vector<8x128xf32>
    %c0_8 = arith.constant 0 : index
    %c0_9 = arith.constant 0 : index
    %9 = vector.load %arg5[%c0_8, %c0_9] : memref<1x128xf32, #tpu.memory_space<vmem>>, vector<1x128xf32>
    %10 = vector.broadcast %9 : vector<1x128xf32> to vector<8x128xf32>
    %11 = arith.addf %8, %10 : vector<8x128xf32>
    %12 = tpu.iota {dimensions = array<i32: 1>} : vector<1x128xi32>
    %c8_i32 = arith.constant 8 : i32
    %13 = vector.broadcast %c8_i32 : i32 to vector<1x128xi32>
    %14 = arith.cmpi slt, %12, %13 : vector<1x128xi32>
    %c16_i32 = arith.constant 16 : i32
    %15 = vector.broadcast %c16_i32 : i32 to vector<1x128xi32>
    %16 = arith.cmpi sge, %12, %15 : vector<1x128xi32>
    %c24_i32 = arith.constant 24 : i32
    %17 = vector.broadcast %c24_i32 : i32 to vector<1x128xi32>
    %18 = arith.cmpi slt, %12, %17 : vector<1x128xi32>
    %19 = arith.andi %16, %18 : vector<1x128xi1>
    %cst_10 = arith.constant 0xFF800000 : f32
    %20 = vector.shape_cast %14 : vector<1x128xi1> to vector<1x128xi1>
    %21 = vector.broadcast %20 : vector<1x128xi1> to vector<8x128xi1>
    %22 = vector.broadcast %cst_10 : f32 to vector<8x128xf32>
    %23 = arith.select %21, %11, %22 : vector<8x128xi1>, vector<8x128xf32>
    %cst_11 = arith.constant dense<0xFF800000> : vector<8xf32>
    %24 = vector.multi_reduction <maximumf>, %23, %cst_11 [1] : vector<8x128xf32> to vector<8xf32>
    %25 = vector.shape_cast %24 : vector<8xf32> to vector<8x1xf32>
    %26 = vector.broadcast %25 : vector<8x1xf32> to vector<8x128xf32>
    %27 = arith.subf %23, %26 : vector<8x128xf32>
    %28 = vector.shape_cast %19 : vector<1x128xi1> to vector<1x128xi1>
    %29 = vector.broadcast %28 : vector<1x128xi1> to vector<8x128xi1>
    %30 = arith.select %29, %11, %27 : vector<8x128xi1>, vector<8x128xf32>
    %31 = math.exp %30 : vector<8x128xf32>
    %cst_12 = arith.constant 0.000000e+00 : f32
    %32 = vector.shape_cast %14 : vector<1x128xi1> to vector<1x128xi1>
    %33 = vector.broadcast %32 : vector<1x128xi1> to vector<8x128xi1>
    %34 = vector.broadcast %cst_12 : f32 to vector<8x128xf32>
    %35 = arith.select %33, %31, %34 : vector<8x128xi1>, vector<8x128xf32>
    %cst_13 = arith.constant dense<0.000000e+00> : vector<8xf32>
    %36 = vector.multi_reduction <add>, %35, %cst_13 [1] : vector<8x128xf32> to vector<8xf32>
    %37 = vector.shape_cast %36 : vector<8xf32> to vector<8x1xf32>
    %38 = tpu.reciprocal %37 : vector<8x1xf32> -> vector<8x1xf32>
    %39 = vector.broadcast %38 : vector<8x1xf32> to vector<8x128xf32>
    %40 = arith.mulf %31, %39 : vector<8x128xf32>
    %41 = vector.shape_cast %19 : vector<1x128xi1> to vector<1x128xi1>
    %42 = vector.broadcast %41 : vector<1x128xi1> to vector<8x128xi1>
    %43 = arith.select %42, %31, %11 : vector<8x128xi1>, vector<8x128xf32>
    %44 = vector.shape_cast %14 : vector<1x128xi1> to vector<1x128xi1>
    %45 = vector.broadcast %44 : vector<1x128xi1> to vector<8x128xi1>
    %46 = arith.select %45, %40, %43 : vector<8x128xi1>, vector<8x128xf32>
    %c0_14 = arith.constant 0 : index
    %c0_15 = arith.constant 0 : index
    %47 = vector.load %arg6[%c0_14, %c0_15] : memref<8x128xf32, #tpu.memory_space<vmem>>, vector<8x128xf32>
    tpu.vector_store %arg6[%c0_14, %c0_15], %46 {strides = array<i32>} : memref<8x128xf32, #tpu.memory_space<vmem>>, vector<8x128xf32>,
    return
  }
  func.func @transform_0(%arg0: i32) -> (i32, i32) {
    %c0_i32 = arith.constant 0 : i32
    %c0_i32_0 = arith.constant 0 : i32
    return %arg0, %c0_i32 : i32, i32
  }
  func.func @transform_1(%arg0: i32) -> (i32, i32) {
    %c0_i32 = arith.constant 0 : i32
    %c0_i32_0 = arith.constant 0 : i32
    %c0_i32_1 = arith.constant 0 : i32
    return %c0_i32, %c0_i32_0 : i32, i32
  }
  func.func @transform_2(%arg0: i32) -> (i32, i32) {
    %c0_i32 = arith.constant 0 : i32
    %c0_i32_0 = arith.constant 0 : i32
    %c0_i32_1 = arith.constant 0 : i32
    return %c0_i32, %c0_i32_0 : i32, i32
  }
  func.func @transform_3(%arg0: i32) -> (i32, i32) {
    %c0_i32 = arith.constant 0 : i32
    %c0_i32_0 = arith.constant 0 : i32
    %c0_i32_1 = arith.constant 0 : i32
    return %c0_i32, %c0_i32_0 : i32, i32
  }
  func.func @transform_4(%arg0: i32) -> (i32, i32) {
    %c0_i32 = arith.constant 0 : i32
    %c0_i32_0 = arith.constant 0 : i32
    %c0_i32_1 = arith.constant 0 : i32
    return %c0_i32, %c0_i32_0 : i32, i32
  }
  func.func @transform_5(%arg0: i32) -> (i32, i32) {
    %c0_i32 = arith.constant 0 : i32
    %c0_i32_0 = arith.constant 0 : i32
    return %arg0, %c0_i32 : i32, i32
  }
}

</mosaic_0001>

<llo_original>
// kernel: tpu_custom_call.1
$region0: #{tpu_custom_call.1}
  #allocation0 [shape = 'u32[]', space=smem, size = 0x4, offset = 0x4, fixed_abs, tag = 'smem constant byte address 0x4 - core index']
  #allocation1 [shape = 'u32[144,128]{1,0:T(1,128)}', space=vmem, size = 0x12000, scoped, tag = 'internal scratch']
  %s0 = inlined_call_operand.hbm [shape: f32[8,16], index: 0, kind: input, shape index: {}]
  %s1 = inlined_call_operand.hbm [shape: f32[16,32], index: 1, kind: input, shape index: {}]
  %s2 = inlined_call_operand.vmem [shape: f32[1,32], index: 2, kind: input, shape index: {}]
  %s3 = inlined_call_operand.hbm [shape: f32[32,128], index: 3, kind: input, shape index: {}]
  %s4 = inlined_call_operand.vmem [shape: f32[1,128], index: 4, kind: input, shape index: {}]
  %s5 = inlined_call_operand.hbm [shape: f32[8,128], index: 5, kind: output, shape index: {}]
  %s6 = sld [smem:[#allocation0]]
  $region42: #{tpu_custom_call.1} parent=0
    _
  %s8 = ssub.s32 1, %s6
  %s9 = scalar_select 0, %s8, %s6
  $region1: #{tpu_custom_call.1} parent=0
    #allocation2 [shape = 'u8[4096]{0}', space=vmem, size = 0x1000, scoped, tag = 'input window, operand 0, single buffered']
    #allocation3 [shape = 's32[1]{0}', space=sflag, size = 0x4, scoped, tag = 'scoped memory for tpu_custom_call.1']
    #allocation4 [shape = 's32[1]{0}', space=sflag, size = 0x4, scoped, tag = 'scoped memory for tpu_custom_call.1']
    #allocation5 [shape = 'u8[8192]{0}', space=vmem, size = 0x2000, scoped, tag = 'input window, operand 1, single buffered']
    #allocation6 [shape = 's32[1]{0}', space=sflag, size = 0x4, scoped, tag = 'scoped memory for tpu_custom_call.1']
    #allocation7 [shape = 'u8[16384]{0}', space=vmem, size = 0x4000, scoped, tag = 'input window, operand 3, single buffered']
    #allocation8 [shape = 'u8[4096]{0}', space=vmem, size = 0x1000, scoped, tag = 'output window, operand 0, single buffered']
    %10 = vsyncpa [#allocation3], 0
    %11 = vsyncpa [#allocation6], 0
    %12 = vsyncpa [#allocation4], 0
    // Predicated region
    $region2: #{tpu_custom_call.1} parent=1 // pred_check
      _
    $region3: #{tpu_custom_call.1} parent=1 // pred_check_branch
      %14 = sbr.rel (0) target = $region5
    $region4: #{tpu_custom_call.1} parent=1 // pred_region
      %s16 = ssub.s32 128, 128
      %17 = vsyncadd [#allocation3], %s16
      %s19 = sshll.u32 [#allocation2], 4
      %s20 = int_to_ptr.vmem [resolvable:$true] %s19
      %22 = dma.hbm_to_vmem [thread:$0]  %s0, 128, %s20, [#allocation3]
    $region5: #{tpu_custom_call.1} parent=1 // pred_fallthru
      _
    // Predicated region
    $region6: #{tpu_custom_call.1} parent=1 // pred_check
      _
    $region7: #{tpu_custom_call.1} parent=1 // pred_check_branch
      %24 = sbr.rel (0) target = $region9
    $region8: #{tpu_custom_call.1} parent=1 // pred_region
      %s26 = ssub.s32 256, 256
      %27 = vsyncadd [#allocation6], %s26
      %s28 = sshll.u32 [#allocation5], 4
      %s29 = int_to_ptr.vmem [resolvable:$true] %s28
      %34 = dma.hbm_to_vmem [thread:$0]  %s1, 256, %s29, [#allocation6], 128, 128, 8
    $region9: #{tpu_custom_call.1} parent=1 // pred_fallthru
      _
    // Predicated region
    $region10: #{tpu_custom_call.1} parent=1 // pred_check
      _
    $region11: #{tpu_custom_call.1} parent=1 // pred_check_branch
      %36 = sbr.rel (0) target = $region13
    $region12: #{tpu_custom_call.1} parent=1 // pred_region
      _
    $region13: #{tpu_custom_call.1} parent=1 // pred_fallthru
      _
    // Predicated region
    $region14: #{tpu_custom_call.1} parent=1 // pred_check
      _
    $region15: #{tpu_custom_call.1} parent=1 // pred_check_branch
      %38 = sbr.rel (0) target = $region17
    $region16: #{tpu_custom_call.1} parent=1 // pred_region
      %s40 = ssub.s32 512, 512
      %41 = vsyncadd [#allocation6], %s40
      %s42 = sshll.u32 [#allocation7], 4
      %s43 = int_to_ptr.vmem [resolvable:$true] %s42
      %48 = dma.hbm_to_vmem [thread:$0]  %s3, 512, %s43, [#allocation6], 128, 128, 8
    $region17: #{tpu_custom_call.1} parent=1 // pred_fallthru
      _
    // Predicated region
    $region18: #{tpu_custom_call.1} parent=1 // pred_check
      _
    $region19: #{tpu_custom_call.1} parent=1 // pred_check_branch
      %50 = sbr.rel (0) target = $region21
    $region20: #{tpu_custom_call.1} parent=1 // pred_region
      _
    $region21: #{tpu_custom_call.1} parent=1 // pred_fallthru
      _
    // Predicated region
    $region22: #{tpu_custom_call.1} parent=1 // pred_check
      _
    $region23: #{tpu_custom_call.1} parent=1 // pred_check_branch
      %52 = sbr.rel (0) target = $region25
    $region24: #{tpu_custom_call.1} parent=1 // pred_region
      %53 = dma.done [#allocation3], 128
    $region25: #{tpu_custom_call.1} parent=1 // pred_fallthru
      _
    // Predicated region
    $region26: #{tpu_custom_call.1} parent=1 // pred_check
      _
    $region27: #{tpu_custom_call.1} parent=1 // pred_check_branch
      %55 = sbr.rel (0) target = $region29
    $region28: #{tpu_custom_call.1} parent=1 // pred_region
      %56 = dma.done [#allocation6], 256
    $region29: #{tpu_custom_call.1} parent=1 // pred_fallthru
      _
    // Predicated region
    $region30: #{tpu_custom_call.1} parent=1 // pred_check
      _
    $region31: #{tpu_custom_call.1} parent=1 // pred_check_branch
      %58 = sbr.rel (0) target = $region33
    $region32: #{tpu_custom_call.1} parent=1 // pred_region
      %59 = dma.done [#allocation6], 512
    $region33: #{tpu_custom_call.1} parent=1 // pred_fallthru
      _
    %v60 = vld [vmem:[#allocation2] sm:$0xff]
    %v61 = vld [vmem:[#allocation5] sm:$0xff]
    %v62 = vld [vmem:[#allocation5 + $0x8] sm:$0xff]
    %v63 = vld [vmem:[%s2] sm:$0x1]
    %v65 = vlaneseq
    %v66 = vshrl.u32 %v65, 7
    %v67 = vsub.s32 0, %v66
    %v68 = vrot.slane %v63, %v67
    %vm70 = vcmask 130048
    %v72 = vsel %vm70, %v60, 0
    %74 = vmatprep.subr.mxu0 0.0
    %75 = vmatpush1.msra.mxu0 %v61
    %76 = vmatprep.subr.mxu0 0.0
    %77 = vmatpush1.msra.mxu0 %v62
    %78 = vmatprep.subr.mxu0 0.0
    %79 = vmatpush1.msra.mxu0 0.0
    %80 = vmatprep.subr.mxu0 0.0
    %81 = vmatpush1.msra.mxu0 0.0
    %82 = vmatprep.subr.mxu0 0.0
    %83 = vmatpush1.msra.mxu0 0.0
    %84 = vmatprep.subr.mxu0 0.0
    %85 = vmatpush1.msra.mxu0 0.0
    %86 = vmatprep.subr.mxu0 0.0
    %87 = vmatpush1.msra.mxu0 0.0
    %88 = vmatprep.subr.mxu0 0.0
    %89 = vmatpush1.msra.mxu0 0.0
    %90 = vmatprep.subr.mxu0 0.0
    %91 = vmatpush1.msra.mxu0 0.0
    %92 = vmatprep.subr.mxu0 0.0
    %93 = vmatpush1.msra.mxu0 0.0
    %94 = vmatprep.subr.mxu0 0.0
    %95 = vmatpush1.msra.mxu0 0.0
    %96 = vmatprep.subr.mxu0 0.0
    %97 = vmatpush1.msra.mxu0 0.0
    %98 = vmatprep.subr.mxu0 0.0
    %99 = vmatpush1.msra.mxu0 0.0
    %100 = vmatprep.subr.mxu0 0.0
    %101 = vmatpush1.msra.mxu0 0.0
    %102 = vmatprep.subr.mxu0 0.0
    %103 = vmatpush1.msra.mxu0 0.0
    %104 = vmatprep.subr.mxu0 0.0
    %105 = vmatpush1.msra.mxu0 0.0
    %106 = vmatprep.subr.mxu0 0.0
    %107 = vmatpush1.msra.mxu0 0.0
    %108 = vmatprep.subr.mxu0 0.0
    %109 = vmatpush1.msra.mxu0 0.0
    %110 = vmatprep.subr.mxu0 0.0
    %111 = vmatpush1.msra.mxu0 0.0
    %112 = vmatprep.subr.mxu0 0.0
    %113 = vmatpush1.msra.mxu0 0.0
    %114 = vmatprep.subr.mxu0 0.0
    %115 = vmatpush1.msra.mxu0 0.0
    %116 = vmatprep.subr.mxu0 0.0
    %117 = vmatpush1.msra.mxu0 0.0
    %118 = vmatprep.subr.mxu0 0.0
    %119 = vmatpush1.msra.mxu0 0.0
    %120 = vmatprep.subr.mxu0 0.0
    %121 = vmatpush1.msra.mxu0 0.0
    %122 = vmatprep.subr.mxu0 0.0
    %123 = vmatpush1.msra.mxu0 0.0
    %124 = vmatprep.subr.mxu0 0.0
    %125 = vmatpush1.msra.mxu0 0.0
    %126 = vmatprep.subr.mxu0 0.0
    %127 = vmatpush1.msra.mxu0 0.0
    %128 = vmatprep.subr.mxu0 0.0
    %129 = vmatpush1.msra.mxu0 0.0
    %130 = vmatprep.subr.mxu0 0.0
    %131 = vmatpush1.msra.mxu0 0.0
    %132 = vmatprep.subr.mxu0 0.0
    %133 = vmatpush1.msra.mxu0 0.0
    %134 = vmatprep.subr.mxu0 0.0
    %135 = vmatpush1.msra.mxu0 0.0
    %136 = vmatprep.subr.mxu0 0.0
    %137 = vmatpush1.msra.mxu0 0.0
    %138 = vmatprep.mubr.f32.mxu0 0.0
    %139 = vmatmul.mubr.f32.gmra.mrb[0].mxu0 %v72
    %v140 = vpop.f32.mrb[0].mxu0
    %v141 = vadd.f32 %v68, %v140
    %v142 = vpop.f32.mrb[0].mxu0
    %143 = vdwg.mxu0
    %v144 = vtanh.pop %v141
    %v145 = vld [vmem:[#allocation7] sm:$0xff]
    %v146 = vld [vmem:[#allocation7 + $0x8] sm:$0xff]
    %v147 = vld [vmem:[#allocation7 + $0x10] sm:$0xff]
    %v148 = vld [vmem:[#allocation7 + $0x18] sm:$0xff]
    %v149 = vld [vmem:[%s4] sm:$0x1]
    %v151 = vlaneseq
    %v152 = vshrl.u32 %v151, 7
    %v153 = vsub.s32 0, %v152
    %v154 = vrot.slane %v149, %v153
    %vm156 = vcmask 261120
    %v158 = vsel %vm156, %v144, 0
    %160 = vmatprep.subr.mxu0 0.0
    %161 = vmatpush1.msra.mxu0 %v145
    %162 = vmatprep.subr.mxu0 0.0
    %163 = vmatpush1.msra.mxu0 %v146
    %164 = vmatprep.subr.mxu0 0.0
    %165 = vmatpush1.msra.mxu0 %v147
    %166 = vmatprep.subr.mxu0 0.0
    %167 = vmatpush1.msra.mxu0 %v148
    %168 = vmatprep.subr.mxu0 0.0
    %169 = vmatpush1.msra.mxu0 0.0
    %170 = vmatprep.subr.mxu0 0.0
    %171 = vmatpush1.msra.mxu0 0.0
    %172 = vmatprep.subr.mxu0 0.0
    %173 = vmatpush1.msra.mxu0 0.0
    %174 = vmatprep.subr.mxu0 0.0
    %175 = vmatpush1.msra.mxu0 0.0
    %176 = vmatprep.subr.mxu0 0.0
    %177 = vmatpush1.msra.mxu0 0.0
    %178 = vmatprep.subr.mxu0 0.0
    %179 = vmatpush1.msra.mxu0 0.0
    %180 = vmatprep.subr.mxu0 0.0
    %181 = vmatpush1.msra.mxu0 0.0
    %182 = vmatprep.subr.mxu0 0.0
    %183 = vmatpush1.msra.mxu0 0.0
    %184 = vmatprep.subr.mxu0 0.0
    %185 = vmatpush1.msra.mxu0 0.0
    %186 = vmatprep.subr.mxu0 0.0
    %187 = vmatpush1.msra.mxu0 0.0
    %188 = vmatprep.subr.mxu0 0.0
    %189 = vmatpush1.msra.mxu0 0.0
    %190 = vmatprep.subr.mxu0 0.0
    %191 = vmatpush1.msra.mxu0 0.0
    %192 = vmatprep.subr.mxu0 0.0
    %193 = vmatpush1.msra.mxu0 0.0
    %194 = vmatprep.subr.mxu0 0.0
    %195 = vmatpush1.msra.mxu0 0.0
    %196 = vmatprep.subr.mxu0 0.0
    %197 = vmatpush1.msra.mxu0 0.0
    %198 = vmatprep.subr.mxu0 0.0
    %199 = vmatpush1.msra.mxu0 0.0
    %200 = vmatprep.subr.mxu0 0.0
    %201 = vmatpush1.msra.mxu0 0.0
    %202 = vmatprep.subr.mxu0 0.0
    %203 = vmatpush1.msra.mxu0 0.0
    %204 = vmatprep.subr.mxu0 0.0
    %205 = vmatpush1.msra.mxu0 0.0
    %206 = vmatprep.subr.mxu0 0.0
    %207 = vmatpush1.msra.mxu0 0.0
    %208 = vmatprep.subr.mxu0 0.0
    %209 = vmatpush1.msra.mxu0 0.0
    %210 = vmatprep.subr.mxu0 0.0
    %211 = vmatpush1.msra.mxu0 0.0
    %212 = vmatprep.subr.mxu0 0.0
    %213 = vmatpush1.msra.mxu0 0.0
    %214 = vmatprep.subr.mxu0 0.0
    %215 = vmatpush1.msra.mxu0 0.0
    %216 = vmatprep.subr.mxu0 0.0
    %217 = vmatpush1.msra.mxu0 0.0
    %218 = vmatprep.subr.mxu0 0.0
    %219 = vmatpush1.msra.mxu0 0.0
    %220 = vmatprep.subr.mxu0 0.0
    %221 = vmatpush1.msra.mxu0 0.0
    %222 = vmatprep.subr.mxu0 0.0
    %223 = vmatpush1.msra.mxu0 0.0
    %224 = vmatprep.mubr.f32.mxu0 0.0
    %225 = vmatmul.mubr.f32.gmra.mrb[0].mxu0 %v158
    %v226 = vpop.f32.mrb[0].mxu0
    %v227 = vadd.f32 %v154, %v226
    %v228 = vpop.f32.mrb[0].mxu0
    %229 = vdwg.mxu0
    %v230 = vlaneseq
    %v231 = vand.u32 %v230, 127
    %vm232 = vcmp.lt.s32.totalorder %v231, 8
    %vm233 = vcmp.ge.s32.totalorder %v231, 16
    %vm234 = vcmp.lt.s32.totalorder %v231, 24
    %vm235 = vmand %vm233, %vm234
    %v236 = vsel %vm232, 1, 0
    %vm237 = vcmp.eq.s32.totalorder %v236, 1
    %v238 = vsel %vm237, %v227, -inf
    %239 = vmax.xlane.f32.xlu0 %v238
    %v240 = vpop.xlane.xlu0 %239
    %v241 = vsub.f32 %v238, %v240
    %v242 = vsel %vm235, 1, 0
    %vm243 = vcmp.eq.s32.totalorder %v242, 1
    %v244 = vsel %vm243, %v227, %v241
    %v245 = vmul.f32 %v244, 1.442695
    %v246 = vpow.pop %v245
    %v247 = vsel %vm237, %v246, 0.0
    %248 = vadd.xlane.f32.xlu0 %v247
    %v249 = vpop.xlane.xlu0 %248
    %v250 = vrcp.pop %v249
    %v251 = vmul.f32 %v246, %v250
    %v252 = vsel %vm243, %v246, %v227
    %v253 = vsel %vm237, %v251, %v252
    %254 = vst [vmem:[#allocation8] sm:$0xff] %v253
    // Predicated region
    $region34: #{tpu_custom_call.1} parent=1 // pred_check
      _
    $region35: #{tpu_custom_call.1} parent=1 // pred_check_branch
      %256 = sbr.rel (0) target = $region37
    $region36: #{tpu_custom_call.1} parent=1 // pred_region
      %s258 = ssub.s32 128, 128
      %259 = vsyncadd [#allocation4], %s258
      %s261 = sshll.u32 [#allocation8], 4
      %s262 = int_to_ptr.vmem [resolvable:$true] %s261
      %264 = dma.vmem_to_hbm [thread:$0]  %s262, 128, %s5, [#allocation4]
    $region37: #{tpu_custom_call.1} parent=1 // pred_fallthru
      _
    // Predicated region
    $region38: #{tpu_custom_call.1} parent=1 // pred_check
      _
    $region39: #{tpu_custom_call.1} parent=1 // pred_check_branch
      %266 = sbr.rel (0) target = $region41
    $region40: #{tpu_custom_call.1} parent=1 // pred_region
      %267 = dma.done [#allocation4], 128
    $region41: #{tpu_custom_call.1} parent=1 // pred_fallthru
      _
    %268 = vsyncpa [#allocation3], 1
    %269 = vsyncpa [#allocation6], 1
    %270 = vsyncpa [#allocation4], 1

</llo_original>
